<compile_context>
chip_gen: v6e
topology: v6e:2x2x1
jax: 0.10.0
libtpu: 0.0.40
codegen_flags: <defaults>
</compile_context>

<pallas_src>
import functools

import jax
import jax.numpy as jnp
from jax.experimental import pallas as pl
from jax.experimental.pallas import tpu as pltpu

_LANE = 128
_SUBLANE = 8
_MIN_GRID_STEPS = 4  # keep the software pipeline / megacore fed


def _soft_clamp_kernel(x_ref, o_ref, *, max_value: float):
    # Compute in f32 (v5e has no bf16 VPU/EUP), cast once at the store.
    x = x_ref[...].astype(jnp.float32)
    above = x > max_value
    # log1p(x - m) == log(1 - m + x) algebraically, but keeps low bits when x
    # is only slightly above max_value (worse after a bf16 load otherwise).
    # The where() guard keeps the non-selected lanes at log1p(0) = 0 (no NaN).
    clamped = max_value + jnp.log1p(jnp.where(above, x - max_value, 0.0))
    o_ref[...] = jnp.where(above, clamped, x).astype(o_ref.dtype)


def _pick_block_rows(rows: int, itemsize: int) -> int:
    """Block rows: MiB-scale, multiple of 8, and >= _MIN_GRID_STEPS steps."""
    if rows <= _SUBLANE:
        return rows  # full-extent block (always a legal block shape)
    # Mem-bound elementwise op: 1-4 MiB tiles already sit at ~85% of the HBM
    # roofline.  Narrow dtypes (bf16 etc.) use 2 MiB so the f32 upcast +
    # where/log temporaries stay well inside v7x's 64 MiB VMEM.
    target_bytes = 4 * 1024 * 1024 if itemsize >= 4 else 2 * 1024 * 1024
    target_rows = max(
        _SUBLANE, (target_bytes // (_LANE * itemsize)) // _SUBLANE * _SUBLANE
    )
    # Cap so the grid has at least ~_MIN_GRID_STEPS steps: with grid=(1,)
    # there is no pipelining and one v7x TensorCore idles.
    per_step = pl.cdiv(rows, _MIN_GRID_STEPS)
    per_step = max(_SUBLANE, ((per_step + _SUBLANE - 1) // _SUBLANE) * _SUBLANE)
    return min(target_rows, per_step)


def soft_clamp(x: jax.Array, max_value: float) -> jax.Array:
    """SoftClamp forward: where(x > m, m + log1p(x - m), x). Any shape."""
    orig_shape = x.shape
    orig_dtype = x.dtype
    n = x.size
    if n == 0:
        return x

    flat = x.reshape(-1)

    # Lane-dense 2D view.  When n is a multiple of 128 this is a free reshape.
    # Otherwise pad with < 128 zeros; the pad is allowed to fuse into the
    # pallas_call input DMA (allow_input_fusion) so it costs no extra HBM
    # pass on the input side, leaving only the final output slice.
    padded = (n % _LANE) != 0
    n_pad = pl.cdiv(n, _LANE) * _LANE
    if padded:
        flat = jnp.pad(flat, (0, n_pad - n))
    rows = n_pad // _LANE
    x2d = flat.reshape(rows, _LANE)

    itemsize = jnp.dtype(orig_dtype).itemsize
    block_rows = _pick_block_rows(rows, itemsize)
    grid = (pl.cdiv(rows, block_rows),)

    # Deeper input pipelining on v7x only: per-step DMA completes in ~2.5 us
    # there, so a 3-deep input buffer hides exposed DMA start latency.
    in_spec_kwargs = {}
    try:
        kind = jax.devices()[0].device_kind.lower()
    except Exception:
        kind = ""
    if "v7" in kind and hasattr(pl, "Buffered"):
        in_spec_kwargs["pipeline_mode"] = pl.Buffered(3)

    out2d = pl.pallas_call(
        functools.partial(_soft_clamp_kernel, max_value=float(max_value)),
        out_shape=jax.ShapeDtypeStruct((rows, _LANE), orig_dtype),
        grid_spec=pltpu.PrefetchScalarGridSpec(
            num_scalar_prefetch=0,
            grid=grid,
            in_specs=[
                pl.BlockSpec((block_rows, _LANE), lambda i: (i, 0),
                             **in_spec_kwargs)
            ],
            out_specs=pl.BlockSpec((block_rows, _LANE), lambda i: (i, 0)),
        ),
        compiler_params=pltpu.CompilerParams(
            dimension_semantics=("parallel",),
            # 2 arrays x 2-3 buffers x <=4 MiB blocks = <=24 MiB; 32 MiB gives
            # headroom and is within every generation's physical VMEM.
            vmem_limit_bytes=32 * 1024 * 1024,
            allow_input_fusion=[True] if padded else None,
        ),
    )(x2d)

    # TODO(synk): input_output_aliases={0: 0} would match PyTorch's in-place
    # semantics and halve peak HBM footprint, but only pays off when the
    # caller donates the input; without donation XLA inserts a defensive
    # copy, so it is intentionally left off here.

    if padded:
        return out2d.reshape(-1)[:n].reshape(orig_shape)
    return out2d.reshape(orig_shape)


def _reference_soft_clamp(x, max_value):
    xf = x.astype(jnp.float32)
    above = xf > max_value
    out = jnp.where(above, max_value + jnp.log(1.0 - max_value + xf), xf)
    return out.astype(x.dtype)


if __name__ == "__main__":
    key = jax.random.PRNGKey(0)
    max_value = 5.0  # Regression.soft_clamp_value in openpifpaf

    # Case 1: aligned NCHW f32 (2*4*16*16 = 2048 elems, multiple of 128).
    x1 = jax.random.normal(key, (2, 4, 16, 16), dtype=jnp.float32) * 3.0
    x1 = x1.at[0, 0, 0, :4].set(jnp.array([6.0, 10.0, 5.5, 100.0]))
    o1 = jax.block_until_ready(soft_clamp(x1, max_value))
    assert o1.shape == x1.shape and o1.dtype == x1.dtype
    assert jnp.allclose(
        o1, _reference_soft_clamp(x1, max_value), atol=1e-5, rtol=1e-5
    ), "mismatch vs reference (aligned f32)"

    # Case 2: ragged element count (not a multiple of 128) -> fused-pad path.
    x2 = jax.random.normal(jax.random.PRNGKey(1), (3, 5, 7, 9), jnp.float32) * 4.0
    o2 = jax.block_until_ready(soft_clamp(x2, max_value))
    assert o2.shape == x2.shape
    assert jnp.allclose(
        o2, _reference_soft_clamp(x2, max_value), atol=1e-5, rtol=1e-5
    ), "mismatch vs reference (ragged f32)"

    # Case 3: bfloat16 input (compute in f32 inside the kernel, cast at store).
    x3 = (
        jax.random.normal(jax.random.PRNGKey(2), (2, 4, 16, 16), jnp.float32) * 4.0
    ).astype(jnp.bfloat16)
    o3 = jax.block_until_ready(soft_clamp(x3, max_value))
    assert o3.dtype == jnp.bfloat16 and o3.shape == x3.shape
    assert jnp.allclose(
        o3.astype(jnp.float32),
        _reference_soft_clamp(x3, max_value).astype(jnp.float32),
        atol=2e-2,
        rtol=2e-2,
    ), "mismatch vs reference (bf16)"

    # Case 4: medium 128-aligned tensor -> multi-step pipelined grid.
    x4 = jax.random.normal(jax.random.PRNGKey(3), (4, 17, 64, 128), jnp.float32) * 4.0
    o4 = jax.block_until_ready(soft_clamp(x4, max_value))
    assert o4.shape == x4.shape
    assert jnp.allclose(
        o4, _reference_soft_clamp(x4, max_value), atol=1e-5, rtol=1e-5
    ), "mismatch vs reference (multi-block f32)"

    print("KERNEL_OK")
</pallas_src>

<mosaic_0001>
module attributes {stable_mosaic.version = 11 : i64} {
  func.func @_soft_clamp_kernel(%arg0: i32, %arg1: memref<8x128xf32, #tpu.memory_space<vmem>>, %arg2: memref<8x128xf32, #tpu.memory_space<vmem>>) attributes {dimension_semantics = [#tpu.dimension_semantics<parallel>], iteration_bounds = array<i64: 2>, scalar_prefetch = 0 : i64, scratch_operands = 0 : i64, tpu.core_type = #tpu.core_type<tc>, window_params = [{transform_indices = @transform_0, window_bounds = array<i64: 8, 128>}, {transform_indices = @transform_1, window_bounds = array<i64: 8, 128>}]} {
    %c0 = arith.constant 0 : index
    %c0_0 = arith.constant 0 : index
    %0 = vector.load %arg1[%c0, %c0_0] : memref<8x128xf32, #tpu.memory_space<vmem>>, vector<8x128xf32>
    %cst = arith.constant 5.000000e+00 : f32
    %1 = vector.broadcast %cst : f32 to vector<8x128xf32>
    %2 = arith.cmpf ogt, %0, %1 : vector<8x128xf32>
    %cst_1 = arith.constant 5.000000e+00 : f32
    %3 = vector.broadcast %cst_1 : f32 to vector<8x128xf32>
    %4 = arith.subf %0, %3 : vector<8x128xf32>
    %cst_2 = arith.constant 0.000000e+00 : f32
    %5 = vector.broadcast %cst_2 : f32 to vector<8x128xf32>
    %6 = arith.select %2, %4, %5 : vector<8x128xi1>, vector<8x128xf32>
    %7 = math.log1p %6 : vector<8x128xf32>
    %cst_3 = arith.constant 5.000000e+00 : f32
    %8 = vector.broadcast %cst_3 : f32 to vector<8x128xf32>
    %9 = arith.addf %8, %7 : vector<8x128xf32>
    %10 = arith.select %2, %9, %0 : vector<8x128xi1>, vector<8x128xf32>
    %c0_4 = arith.constant 0 : index
    %c0_5 = arith.constant 0 : index
    %11 = vector.load %arg2[%c0_4, %c0_5] : memref<8x128xf32, #tpu.memory_space<vmem>>, vector<8x128xf32>
    tpu.vector_store %arg2[%c0_4, %c0_5], %10 {strides = array<i32>} : memref<8x128xf32, #tpu.memory_space<vmem>>, vector<8x128xf32>,
    return
  }
  func.func @transform_0(%arg0: i32) -> (i32, i32) {
    %c0_i32 = arith.constant 0 : i32
    %c0_i32_0 = arith.constant 0 : i32
    return %arg0, %c0_i32 : i32, i32
  }
  func.func @transform_1(%arg0: i32) -> (i32, i32) {
    %c0_i32 = arith.constant 0 : i32
    %c0_i32_0 = arith.constant 0 : i32
    return %arg0, %c0_i32 : i32, i32
  }
}

</mosaic_0001>

<llo_original>
// kernel: tpu_custom_call.1
$region0: #{tpu_custom_call.1}
  #allocation0 [shape = 'u32[]', space=smem, size = 0x4, offset = 0x4, fixed_abs, tag = 'smem constant byte address 0x4 - core index']
  #allocation1 [shape = 'u32[144,128]{1,0:T(1,128)}', space=vmem, size = 0x12000, scoped, tag = 'internal scratch']
  %s0 = inlined_call_operand.hbm [shape: f32[16,128], index: 0, kind: input, shape index: {}]
  %s1 = inlined_call_operand.hbm [shape: f32[16,128], index: 1, kind: output, shape index: {}]
  %s2 = sld [smem:[#allocation0]]
  $region41: #{tpu_custom_call.1} parent=0
    _
  %s4 = ssub.s32 1, %s2
  %s5 = scalar_select 0, %s4, %s2
  $region1: #{tpu_custom_call.1} parent=0
    #allocation2 [shape = 'u8[8192]{0}', space=vmem, size = 0x2000, scoped, tag = 'input window, operand 0']
    #allocation3 [shape = 's32[2]{0}', space=sflag, size = 0x8, scoped, tag = 'scoped memory for tpu_custom_call.1']
    #allocation4 [shape = 's32[2]{0}', space=sflag, size = 0x8, scoped, tag = 'scoped memory for tpu_custom_call.1']
    #allocation5 [shape = 'u8[8192]{0}', space=vmem, size = 0x2000, scoped, tag = 'output window, operand 0']
    %6 = vsyncpa [#allocation3], 0
    %s7 = scalar_lea.sflag [#allocation3], 1
    %8 = vsyncpa %s7, 0
    %9 = vsyncpa [#allocation4], 0
    %s10 = scalar_lea.sflag [#allocation4], 1
    %11 = vsyncpa %s10, 0
    loop: start=0, step=1, limit=4
    $region2: #{tpu_custom_call.1} parent=1 // loop_pre_header
      _
    $region3: #{tpu_custom_call.1} parent=1 // loop_header
      %s13 = sphi 0, %s17
      %p14 = scmp.ge.s32.totalorder %s13, 4
      %s23 = sphi 0, %s25
      %s26 = sphi 0, %s23
      %s27 = sphi 0, %s26
      %s43 = sphi 0, %s27
      %s49 = sphi 0, %s51
      %s52 = sphi 0, %s49
      %s53 = sphi 0, %s52
      %s69 = sphi 0, %s53
    $region4: #{tpu_custom_call.1} parent=1 // loop_header_branch
      %16 = sbr.rel (%p14) target = $region8
    $region5: #{tpu_custom_call.1} parent=1 // loop_body
      %s18 = ssub.s32 %s13, 1
      %s19 = ssub.s32 %s13, 2
      %s20 = sadd.s32 %s13, 1
      %s21 = ssub.s32 %s13, %s20
      %p22 = scmp.eq.s32.totalorder %s21, 0
      %s24 = sadd.s32 %s23, 1
      %s25 = scalar_select %p22, %s23, %s24
      %p28 = pneg %p22
      %p29 = scmp.eq.s32.totalorder %s13, 1
      %p30 = por %p28, %p29
      %p31 = scmp.ne.s32.totalorder %s23, %s26
      %p32 = scmp.eq.s32.totalorder %s13, 0
      %p33 = por %p31, %p32
      %p34 = scmp.ne.s32.totalorder %s23, %s26
      %p35 = scmp.eq.s32.totalorder %s18, 1
      %p36 = por %p34, %p35
      %p37 = scmp.ne.s32.totalorder %s26, %s27
      %p38 = scmp.eq.s32.totalorder %s18, 0
      %p39 = por %p37, %p38
      %p40 = scmp.ne.s32.totalorder %s26, %s27
      %p41 = scmp.eq.s32.totalorder %s19, 1
      %p42 = por %p40, %p41
      %p44 = scmp.ne.s32.totalorder %s27, %s43
      %p45 = scmp.eq.s32.totalorder %s19, 0
      %p46 = por %p44, %p45
      %s47 = ssub.s32 %s13, %s20
      %p48 = scmp.eq.s32.totalorder %s47, 0
      %s50 = sadd.s32 %s49, 1
      %s51 = scalar_select %p48, %s49, %s50
      %p54 = pneg %p48
      %p55 = scmp.eq.s32.totalorder %s13, 1
      %p56 = por %p54, %p55
      %p57 = scmp.ne.s32.totalorder %s49, %s52
      %p58 = scmp.eq.s32.totalorder %s13, 0
      %p59 = por %p57, %p58
      %p60 = scmp.ne.s32.totalorder %s49, %s52
      %p61 = scmp.eq.s32.totalorder %s18, 1
      %p62 = por %p60, %p61
      %p63 = scmp.ne.s32.totalorder %s52, %s53
      %p64 = scmp.eq.s32.totalorder %s18, 0
      %p65 = por %p63, %p64
      %p66 = scmp.ne.s32.totalorder %s52, %s53
      %p67 = scmp.eq.s32.totalorder %s19, 1
      %p68 = por %p66, %p67
      %p70 = scmp.ne.s32.totalorder %s53, %s69
      %p71 = scmp.eq.s32.totalorder %s19, 0
      %p72 = por %p70, %p71
      %p73 = scmp.le.s32.totalorder 1, %s13
      %p74 = scmp.lt.s32.totalorder %s13, 3
      %p75 = pnand %p73, %p74
      %p76 = pneg %p75
      // Predicated region
      $region9: #{tpu_custom_call.1} parent=5 // pred_check
        _
      $region10: #{tpu_custom_call.1} parent=5 // pred_check_branch
        %78 = sbr.rel (%p75) target = $region12
      $region11: #{tpu_custom_call.1} parent=5 // pred_region
        %s79 = ssub.s32 %s13, 1
      $region12: #{tpu_custom_call.1} parent=5 // pred_fallthru
        _
      %p80 = scmp.lt.s32.totalorder %s13, 2
      // Predicated region
      $region13: #{tpu_custom_call.1} parent=5 // pred_check
        %p81 = pneg %p80
      $region14: #{tpu_custom_call.1} parent=5 // pred_check_branch
        %83 = sbr.rel (%p81) target = $region16
      $region15: #{tpu_custom_call.1} parent=5 // pred_region
        // Predicated region
        $region17: #{tpu_custom_call.1} parent=15 // pred_check
          %p84 = pneg %p33
        $region18: #{tpu_custom_call.1} parent=15 // pred_check_branch
          %86 = sbr.rel (%p84) target = $region20
        $region19: #{tpu_custom_call.1} parent=15 // pred_region
          %s87 = sand.u32 %s23, 1
          %s88 = scalar_lea.sflag [#allocation3], %s87
          %s89 = sand.u32 %s23, 1
          %s90 = smul.addr %s89, 8
          %s91 = scalar_lea.vmem [#allocation2], %s90
          %s93 = ssub.s32 128, 128
          %94 = vsyncadd %s88, %s93
          %s95 = smul.addr %s13, 128
          %s96 = scalar_lea.hbm %s0, %s95
          %s98 = sshll.u32 %s91, 4
          %s99 = int_to_ptr.vmem [resolvable:$true] %s98
          %101 = dma.hbm_to_vmem [thread:$0]  %s96, 128, %s99, %s88
        $region20: #{tpu_custom_call.1} parent=15 // pred_fallthru
          _
      $region16: #{tpu_custom_call.1} parent=5 // pred_fallthru
        _
      %p102 = scmp.le.s32.totalorder 1, %s13
      %p103 = scmp.lt.s32.totalorder %s13, 3
      %p104 = pnand %p102, %p103
      %p105 = pneg %p104
      // Predicated region
      $region21: #{tpu_custom_call.1} parent=5 // pred_check
        _
      $region22: #{tpu_custom_call.1} parent=5 // pred_check_branch
        %107 = sbr.rel (%p104) target = $region24
      $region23: #{tpu_custom_call.1} parent=5 // pred_region
        %s108 = ssub.s32 %s13, 1
        %s109 = sand.u32 %s26, 1
        %s110 = scalar_lea.sflag [#allocation3], %s109
        %s111 = sand.u32 %s26, 1
        %s112 = smul.addr %s111, 8
        %s113 = scalar_lea.vmem [#allocation2], %s112
        // Predicated region
        $region25: #{tpu_custom_call.1} parent=23 // pred_check
          %p114 = pneg %p39
        $region26: #{tpu_custom_call.1} parent=23 // pred_check_branch
          %116 = sbr.rel (%p114) target = $region28
        $region27: #{tpu_custom_call.1} parent=23 // pred_region
          %117 = dma.done %s110, 128
        $region28: #{tpu_custom_call.1} parent=23 // pred_fallthru
          _
        %s118 = sand.u32 %s26, 1
        %s119 = scalar_lea.sflag [#allocation3], %s118
        %s120 = sand.u32 %s26, 1
        %s121 = smul.addr %s120, 8
        %s122 = scalar_lea.vmem [#allocation2], %s121
        %p123 = pneg %p39
        %p124 = pneg %p36
        %p125 = pneg %p65
        %p126 = pneg %p62
        %s127 = sand.u32 %s52, 1
        %s128 = scalar_lea.sflag [#allocation4], %s127
        %s129 = sand.u32 %s52, 1
        %s130 = smul.addr %s129, 8
        %s131 = scalar_lea.vmem [#allocation5], %s130
        %v132 = vld [vmem:[%s113] sm:$0xff]
        %vm133 = vcmp.gt.f32.partialorder %v132, 5.0
        %v134 = vsub.f32 %v132, 5.0
        %v135 = vsel %vm133, %v134, 0.0
        %v136 = vadd.f32 %v135, 1.0
        %v137 = vlog2.pop %v136
        %v138 = vmul.f32 %v137, 0.6931472
        %v139 = vmul.f32 -0.5, %v135
        %v140 = vadd.f32 %v139, 1.0
        %v141 = vmul.f32 %v140, %v135
        %v142 = vand.u32 2147483647, %v135
        %vm143 = vcmp.lt.f32.partialorder %v142, 0.0004427343
        %v144 = vsel %vm143, %v141, %v138
        %v145 = vadd.f32 %v144, 5.0
        %v146 = vsel %vm133, %v145, %v132
        %147 = vst [vmem:[%s131] sm:$0xff] %v146
        %s148 = sand.u32 %s52, 1
        %s149 = scalar_lea.sflag [#allocation4], %s148
        %s150 = sand.u32 %s52, 1
        %s151 = smul.addr %s150, 8
        %s152 = scalar_lea.vmem [#allocation5], %s151
        // Predicated region
        $region29: #{tpu_custom_call.1} parent=23 // pred_check
          %p153 = pneg %p62
        $region30: #{tpu_custom_call.1} parent=23 // pred_check_branch
          %155 = sbr.rel (%p153) target = $region32
        $region31: #{tpu_custom_call.1} parent=23 // pred_region
          %s157 = ssub.s32 128, 128
          %158 = vsyncadd %s149, %s157
          %s159 = smul.addr %s18, 128
          %s160 = scalar_lea.hbm %s1, %s159
          %s162 = sshll.u32 %s152, 4
          %s163 = int_to_ptr.vmem [resolvable:$true] %s162
          %165 = dma.vmem_to_hbm [thread:$0]  %s163, 128, %s160, %s149
        $region32: #{tpu_custom_call.1} parent=23 // pred_fallthru
          _
      $region24: #{tpu_custom_call.1} parent=5 // pred_fallthru
        _
      %p166 = scmp.le.s32.totalorder 2, %s13
      // Predicated region
      $region33: #{tpu_custom_call.1} parent=5 // pred_check
        %p167 = pneg %p166
      $region34: #{tpu_custom_call.1} parent=5 // pred_check_branch
        %169 = sbr.rel (%p167) target = $region36
      $region35: #{tpu_custom_call.1} parent=5 // pred_region
        %s170 = ssub.s32 %s13, 2
        // Predicated region
        $region37: #{tpu_custom_call.1} parent=35 // pred_check
          %p171 = pneg %p68
        $region38: #{tpu_custom_call.1} parent=35 // pred_check_branch
          %173 = sbr.rel (%p171) target = $region40
        $region39: #{tpu_custom_call.1} parent=35 // pred_region
          %s174 = sand.u32 %s53, 1
          %s175 = scalar_lea.sflag [#allocation4], %s174
          %s176 = sand.u32 %s53, 1
          %s177 = smul.addr %s176, 8
          %s178 = scalar_lea.vmem [#allocation5], %s177
          %179 = dma.done %s175, 128
        $region40: #{tpu_custom_call.1} parent=35 // pred_fallthru
          _
      $region36: #{tpu_custom_call.1} parent=5 // pred_fallthru
        _
    $region6: #{tpu_custom_call.1} parent=1 // loop_footer
      %s17 = sadd.s32 1, %s13
    $region7: #{tpu_custom_call.1} parent=1 // loop_footer_branch
      %12 = sbr.rel target = $region3
    $region8: #{tpu_custom_call.1} parent=1 // loop_exit
      _
    %180 = vsyncpa [#allocation3], 1
    %s181 = scalar_lea.sflag [#allocation3], 1
    %182 = vsyncpa %s181, 1
    %183 = vsyncpa [#allocation4], 1
    %s184 = scalar_lea.sflag [#allocation4], 1
    %185 = vsyncpa %s184, 1

</llo_original>
